<compile_context>
chip_gen: v7x
topology: tpu7x:2x2x1
jax: 0.10.0
libtpu: 0.0.40
codegen_flags: <defaults>
</compile_context>

<pallas_src>
import functools

import jax
import jax.numpy as jnp
import numpy as np
from jax.experimental import pallas as pl
from jax.experimental.pallas import tpu as pltpu

HIDDEN = 32    # config.hidden_size (stand-in)
GROUP = 2      # data_args.train_group_size
SEQ = 8
VOCAB = 64
EPS = 1e-8     # torch.cosine_similarity default eps

H_PAD = 128    # padded hidden / vocab width (lane axis); 128 is native everywhere


def _round_up(x, m):
    return ((x + m - 1) // m) * m


# ---------------------------------------------------------------------------
# Fused Pallas kernel: folded embedding+projection, cosine, cross-entropy
# ---------------------------------------------------------------------------
def _retriever_fused_kernel(ids_ref, table_ref, b_ref, cos_ref, loss_ref, *,
                            batch, group, q_pad, d_pad):
    # ids:   [r_pad, 1] int32  (rows 0..batch-1: query CLS ids,
    #                           rows q_pad..q_pad+batch*group-1: doc CLS ids,
    #                           pad rows: -1 -> zero one-hot row)
    # table: [H_PAD, H_PAD] f32  (emb @ w, zero-padded), b: [1, H_PAD] f32
    # cos_ref:  [q_pad, d_pad]   all-pairs cosine slab
    # loss_ref: [1, 1]           mean cross-entropy loss
    r_pad = q_pad + d_pad
    ids = ids_ref[...]                                              # [r_pad,1]

    # Embedding lookup + linear projection fused as ONE one-hot MXU matmul
    # against the pre-folded table = emb @ w.
    vocab_iota = jax.lax.broadcasted_iota(jnp.int32, (r_pad, H_PAD), 1)
    onehot = jnp.where(ids == vocab_iota, 1.0, 0.0)                 # [r_pad,128]
    cls = jnp.dot(onehot, table_ref[...],
                  preferred_element_type=jnp.float32) + b_ref[...]  # [r_pad,128]

    q = cls[0:q_pad, :]                                             # [q_pad,128]
    d = cls[q_pad:r_pad, :]                                         # [d_pad,128]

    # All-pairs scores S[i, j] = q_i . d_j (MXU, contract last dims).
    S = jax.lax.dot_general(q, d, (((1,), (1,)), ((), ())),
                            preferred_element_type=jnp.float32)     # [q_pad,d_pad]
    q2 = jnp.sum(q * q, axis=-1, keepdims=True)                     # [q_pad,1]
    ones_row = jnp.ones((1, H_PAD), jnp.float32)
    d2 = jax.lax.dot_general(ones_row, d * d, (((1,), (1,)), ((), ())),
                             preferred_element_type=jnp.float32)    # [1,d_pad]

    # torch.cosine_similarity clamp:  dot / max(|q||d|, eps)
    #   == dot * rsqrt(max(q2 * d2, eps^2))   (rsqrt runs on the EUP slot)
    inv = jax.lax.rsqrt(jnp.maximum(q2 * d2, EPS * EPS))            # [q_pad,d_pad]
    cosS = S * inv
    cos_ref[...] = cosS

    # CrossEntropyLoss(reduction='mean')(cos * 10, zeros): for query row b the
    # doc group occupies lanes [b*group, b*group+group); target is lane b*group.
    logits = cosS * 10.0
    lane = jax.lax.broadcasted_iota(jnp.int32, (q_pad, d_pad), 1)
    row = jax.lax.broadcasted_iota(jnp.int32, (q_pad, d_pad), 0)
    grp0 = row * group
    in_group = (lane >= grp0) & (lane < grp0 + group)
    masked = jnp.where(in_group, logits, -1e30)
    m = jnp.max(masked, axis=-1, keepdims=True)                     # [q_pad,1]
    lse = m + jnp.log(jnp.sum(jnp.exp(masked - m), axis=-1, keepdims=True))
    first = jnp.sum(jnp.where(lane == grp0, logits, 0.0),
                    axis=-1, keepdims=True)                         # [q_pad,1]
    per_ex = lse - first
    rowv = jax.lax.broadcasted_iota(jnp.int32, (q_pad, 1), 0)
    per_ex = jnp.where(rowv < batch, per_ex, 0.0)                   # mask pad rows
    loss_ref[...] = jnp.sum(per_ex, axis=0, keepdims=True) * (1.0 / batch)


def pallas_retriever_fused(ids_col, table_pad, b_pad, *, batch, group,
                           q_pad, d_pad):
    r_pad = q_pad + d_pad
    kernel = functools.partial(_retriever_fused_kernel, batch=batch, group=group,
                               q_pad=q_pad, d_pad=d_pad)
    flops = (2 * r_pad * H_PAD * H_PAD          # onehot @ table
             + 2 * q_pad * d_pad * H_PAD        # all-pairs scores
             + 2 * d_pad * H_PAD)               # doc norms via ones-row matmul
    bytes_accessed = (r_pad * 4 + H_PAD * H_PAD * 4 + H_PAD * 4
                      + q_pad * d_pad * 4 + 4)
    transcendentals = 2 * q_pad * d_pad + q_pad  # rsqrt + exp + log
    return pl.pallas_call(
        kernel,
        out_shape=(
            jax.ShapeDtypeStruct((q_pad, d_pad), jnp.float32),
            jax.ShapeDtypeStruct((1, 1), jnp.float32),
        ),
        in_specs=[pl.BlockSpec(memory_space=pltpu.MemorySpace.VMEM)] * 3,
        out_specs=(
            pl.BlockSpec(memory_space=pltpu.MemorySpace.VMEM),
            pl.BlockSpec(memory_space=pltpu.MemorySpace.VMEM),
        ),
        cost_estimate=pl.CostEstimate(flops=flops,
                                      transcendentals=transcendentals,
                                      bytes_accessed=bytes_accessed),
    )(ids_col, table_pad, b_pad)


# ---------------------------------------------------------------------------
# Parameters + forward (stand-in encoder is deterministic, init'd in-script)
# ---------------------------------------------------------------------------
def init_params(key):
    k1, k2 = jax.random.split(key)
    emb = jax.random.normal(k1, (VOCAB, HIDDEN), jnp.float32) * 0.02
    w = jax.random.normal(k2, (HIDDEN, HIDDEN), jnp.float32) * 0.02
    b = jnp.zeros((HIDDEN,), jnp.float32)
    # Fold embedding table and projection into one table = emb @ w (host-side,
    # tiny [64,32]x[32,32] matmul), zero-padded lane-dense.
    table = jnp.dot(emb, w, precision=jax.lax.Precision.HIGHEST)
    table_pad = jnp.zeros((H_PAD, H_PAD), jnp.float32).at[:VOCAB, :HIDDEN].set(table)
    b_pad = jnp.zeros((1, H_PAD), jnp.float32).at[0, :HIDDEN].set(b)
    return {"table_pad": table_pad, "b_pad": b_pad, "emb": emb, "w": w, "b": b}


def retriever_cosine_forward(params, qry_input_ids, doc_input_ids,
                             group_size=GROUP, training=True):
    # TODO(synk): the HF PreTrainedModel encoder is replaced by a synthetic
    # deterministic encoder (CLS-token embedding -> linear projection), fused
    # into the Pallas kernel via a one-hot MXU lookup of the folded table.
    table_pad, b_pad = params["table_pad"], params["b_pad"]
    B = qry_input_ids.shape[0]
    nd = doc_input_ids.shape[0]
    assert nd == B * group_size

    # Minimal sublane-aligned padding (8 or next multiple of 8), not 128/136.
    q_pad = max(8, _round_up(B, 8))
    d_pad = max(8, _round_up(nd, 8))
    r_pad = q_pad + d_pad

    # Pack query + doc CLS token ids into the padded row layout; pad rows get
    # id = -1 so their one-hot rows are exactly zero inside the kernel.
    ids = jnp.full((r_pad,), -1, jnp.int32)
    ids = ids.at[:B].set(qry_input_ids[:, 0].astype(jnp.int32))
    ids = ids.at[q_pad:q_pad + nd].set(doc_input_ids[:, 0].astype(jnp.int32))
    ids_col = ids[:, None]                                      # [r_pad, 1]

    cos_slab, loss_out = pallas_retriever_fused(
        ids_col, table_pad, b_pad, batch=B, group=group_size,
        q_pad=q_pad, d_pad=d_pad)

    # cos[b, g] = cos(query b, doc b*group+g): one reshape + diagonal gather
    # (replaces the previous per-query Python loop of dynamic slices).
    cos_all = cos_slab[:B, :nd].reshape(B, B, group_size)
    cos = jnp.swapaxes(jnp.diagonal(cos_all, axis1=0, axis2=1), 0, 1)  # [B, G]
    if not training:
        return cos
    loss = loss_out[0, 0]
    return loss, loss


def reference_forward(params, qry_input_ids, doc_input_ids, group_size=GROUP):
    emb, w, b = params["emb"], params["w"], params["b"]
    hp = jax.lax.Precision.HIGHEST
    qcls = jnp.dot(emb[qry_input_ids[:, 0]], w, precision=hp) + b
    dcls = jnp.dot(emb[doc_input_ids[:, 0]], w, precision=hp) + b
    B = qcls.shape[0]
    dreps = dcls.reshape(B, group_size, HIDDEN)
    qexp = jnp.broadcast_to(qcls[:, None, :], dreps.shape)
    num = jnp.sum(qexp * dreps, axis=-1)
    den = jnp.maximum(
        jnp.linalg.norm(qexp, axis=-1) * jnp.linalg.norm(dreps, axis=-1), EPS)
    cos = num / den
    logits = cos * 10.0
    lse = jax.nn.logsumexp(logits, axis=-1)
    loss = jnp.mean(lse - logits[:, 0])
    return cos, loss


if __name__ == "__main__":
    key = jax.random.PRNGKey(0)
    kp, kq, kd = jax.random.split(key, 3)

    params = init_params(kp)
    B = 2                                         # per_device_train_batch_size
    qry_input_ids = jax.random.randint(kq, (B, SEQ), 0, VOCAB, dtype=jnp.int32)
    doc_input_ids = jax.random.randint(kd, (B * GROUP, SEQ), 0, VOCAB,
                                       dtype=jnp.int32)

    # training=True path: returns (loss, loss) like the PyTorch module
    loss, loss2 = retriever_cosine_forward(params, qry_input_ids, doc_input_ids,
                                           training=True)
    loss = jax.block_until_ready(loss)

    # eval path: returns the cosine similarities [B, GROUP]
    cos = jax.block_until_ready(
        retriever_cosine_forward(params, qry_input_ids, doc_input_ids,
                                 training=False))

    cos_ref, loss_ref = reference_forward(params, qry_input_ids, doc_input_ids)
    np.testing.assert_allclose(np.asarray(cos), np.asarray(cos_ref),
                               rtol=2e-4, atol=1e-5)
    np.testing.assert_allclose(float(loss), float(loss_ref),
                               rtol=2e-4, atol=1e-5)
    assert float(loss) == float(loss2)

    print("KERNEL_OK")
</pallas_src>

<mosaic_0001>
module attributes {stable_mosaic.version = 11 : i64} {
  func.func @_retriever_fused_kernel(%arg0: memref<16x1xi32, #tpu.memory_space<vmem>>, %arg1: memref<128x128xf32, #tpu.memory_space<vmem>>, %arg2: memref<1x128xf32, #tpu.memory_space<vmem>>, %arg3: memref<8x8xf32, #tpu.memory_space<vmem>>, %arg4: memref<1x1xf32, #tpu.memory_space<vmem>>) attributes {dimension_semantics = [], scalar_prefetch = 0 : i64, scratch_operands = 0 : i64, tpu.core_type = #tpu.core_type<tc>} {
    %c0 = arith.constant 0 : index
    %c0_0 = arith.constant 0 : index
    %0 = vector.load %arg0[%c0, %c0_0] : memref<16x1xi32, #tpu.memory_space<vmem>>, vector<16x1xi32>
    %1 = tpu.iota {dimensions = array<i32: 1>} : vector<16x128xi32>
    %2 = vector.broadcast %0 : vector<16x1xi32> to vector<16x128xi32>
    %3 = arith.cmpi eq, %2, %1 : vector<16x128xi32>
    %cst = arith.constant 1.000000e+00 : f32
    %cst_1 = arith.constant 0.000000e+00 : f32
    %4 = vector.broadcast %cst : f32 to vector<16x128xf32>
    %5 = vector.broadcast %cst_1 : f32 to vector<16x128xf32>
    %6 = arith.select %3, %4, %5 : vector<16x128xi1>, vector<16x128xf32>
    %c0_2 = arith.constant 0 : index
    %c0_3 = arith.constant 0 : index
    %7 = vector.load %arg1[%c0_2, %c0_3] : memref<128x128xf32, #tpu.memory_space<vmem>>, vector<128x128xf32>
    %cst_4 = arith.constant dense<0.000000e+00> : vector<16x128xf32>
    %8 = tpu.matmul %6, %7, %cst_4 {dimension_numbers = #tpu.dot_dimension_numbers<[1], [0], [0], [1], [0, 0, 1, 1], [], []>} : vector<16x128xf32>, vector<128x128xf32>, vector<16x128xf32> -> vector<16x128xf32>
    %c0_5 = arith.constant 0 : index
    %c0_6 = arith.constant 0 : index
    %9 = vector.load %arg2[%c0_5, %c0_6] : memref<1x128xf32, #tpu.memory_space<vmem>>, vector<1x128xf32>
    %10 = vector.broadcast %9 : vector<1x128xf32> to vector<16x128xf32>
    %11 = arith.addf %8, %10 : vector<16x128xf32>
    %12 = vector.extract_strided_slice %11 {offsets = [0, 0], sizes = [8, 128], strides = [1, 1]} : vector<16x128xf32> to vector<8x128xf32>
    %13 = vector.extract_strided_slice %11 {offsets = [8, 0], sizes = [8, 128], strides = [1, 1]} : vector<16x128xf32> to vector<8x128xf32>
    %cst_7 = arith.constant dense<0.000000e+00> : vector<8x8xf32>
    %14 = tpu.matmul %12, %13, %cst_7 {dimension_numbers = #tpu.dot_dimension_numbers<[1], [1], [0], [0], [0, 0, 1, 0], [], []>} : vector<8x128xf32>, vector<8x128xf32>, vector<8x8xf32> -> vector<8x8xf32>
    %15 = arith.mulf %12, %12 : vector<8x128xf32>
    %cst_8 = arith.constant dense<0.000000e+00> : vector<8xf32>
    %16 = vector.multi_reduction <add>, %15, %cst_8 [1] : vector<8x128xf32> to vector<8xf32>
    %17 = vector.shape_cast %16 : vector<8xf32> to vector<8x1xf32>
    %cst_9 = arith.constant 1.000000e+00 : f32
    %18 = vector.broadcast %cst_9 : f32 to vector<1x128xf32>
    %19 = arith.mulf %13, %13 : vector<8x128xf32>
    %cst_10 = arith.constant dense<0.000000e+00> : vector<1x8xf32>
    %20 = tpu.matmul %18, %19, %cst_10 {dimension_numbers = #tpu.dot_dimension_numbers<[1], [1], [0], [0], [0, 0, 1, 0], [], []>} : vector<1x128xf32>, vector<8x128xf32>, vector<1x8xf32> -> vector<1x8xf32>
    %21 = vector.broadcast %17 : vector<8x1xf32> to vector<8x8xf32>
    %22 = vector.broadcast %20 : vector<1x8xf32> to vector<8x8xf32>
    %23 = arith.mulf %21, %22 : vector<8x8xf32>
    %cst_11 = arith.constant 1.000000e-16 : f32
    %24 = vector.broadcast %cst_11 : f32 to vector<8x8xf32>
    %25 = arith.maximumf %23, %24 : vector<8x8xf32>
    %26 = math.rsqrt %25 : vector<8x8xf32>
    %27 = arith.mulf %14, %26 : vector<8x8xf32>
    %c0_12 = arith.constant 0 : index
    %c0_13 = arith.constant 0 : index
    %28 = vector.load %arg3[%c0_12, %c0_13] : memref<8x8xf32, #tpu.memory_space<vmem>>, vector<8x8xf32>
    tpu.vector_store %arg3[%c0_12, %c0_13], %27 {strides = array<i32>} : memref<8x8xf32, #tpu.memory_space<vmem>>, vector<8x8xf32>,
    %cst_14 = arith.constant 1.000000e+01 : f32
    %29 = vector.broadcast %cst_14 : f32 to vector<8x8xf32>
    %30 = arith.mulf %27, %29 : vector<8x8xf32>
    %31 = tpu.iota {dimensions = array<i32: 1>} : vector<8x8xi32>
    %32 = tpu.iota {dimensions = array<i32: 0>} : vector<8x8xi32>
    %c2_i32 = arith.constant 2 : i32
    %33 = vector.broadcast %c2_i32 : i32 to vector<8x8xi32>
    %34 = arith.muli %32, %33 : vector<8x8xi32>
    %35 = arith.cmpi sge, %31, %34 : vector<8x8xi32>
    %c2_i32_15 = arith.constant 2 : i32
    %36 = vector.broadcast %c2_i32_15 : i32 to vector<8x8xi32>
    %37 = arith.addi %34, %36 : vector<8x8xi32>
    %38 = arith.cmpi slt, %31, %37 : vector<8x8xi32>
    %39 = arith.andi %35, %38 : vector<8x8xi1>
    %cst_16 = arith.constant -1.000000e+30 : f32
    %40 = vector.broadcast %cst_16 : f32 to vector<8x8xf32>
    %41 = arith.select %39, %30, %40 : vector<8x8xi1>, vector<8x8xf32>
    %cst_17 = arith.constant dense<0xFF800000> : vector<8xf32>
    %42 = vector.multi_reduction <maximumf>, %41, %cst_17 [1] : vector<8x8xf32> to vector<8xf32>
    %43 = vector.shape_cast %42 : vector<8xf32> to vector<8x1xf32>
    %44 = vector.broadcast %43 : vector<8x1xf32> to vector<8x8xf32>
    %45 = arith.subf %41, %44 : vector<8x8xf32>
    %46 = math.exp %45 : vector<8x8xf32>
    %cst_18 = arith.constant dense<0.000000e+00> : vector<8xf32>
    %47 = vector.multi_reduction <add>, %46, %cst_18 [1] : vector<8x8xf32> to vector<8xf32>
    %48 = vector.shape_cast %47 : vector<8xf32> to vector<8x1xf32>
    %49 = math.log %48 : vector<8x1xf32>
    %50 = arith.addf %43, %49 : vector<8x1xf32>
    %51 = arith.cmpi eq, %31, %34 : vector<8x8xi32>
    %cst_19 = arith.constant 0.000000e+00 : f32
    %52 = vector.broadcast %cst_19 : f32 to vector<8x8xf32>
    %53 = arith.select %51, %30, %52 : vector<8x8xi1>, vector<8x8xf32>
    %cst_20 = arith.constant dense<0.000000e+00> : vector<8xf32>
    %54 = vector.multi_reduction <add>, %53, %cst_20 [1] : vector<8x8xf32> to vector<8xf32>
    %55 = vector.shape_cast %54 : vector<8xf32> to vector<8x1xf32>
    %56 = arith.subf %50, %55 : vector<8x1xf32>
    %57 = tpu.iota {dimensions = array<i32: 0>} : vector<8x1xi32>
    %c2_i32_21 = arith.constant 2 : i32
    %58 = vector.broadcast %c2_i32_21 : i32 to vector<8x1xi32>
    %59 = arith.cmpi slt, %57, %58 : vector<8x1xi32>
    %cst_22 = arith.constant 0.000000e+00 : f32
    %60 = vector.broadcast %cst_22 : f32 to vector<8x1xf32>
    %61 = arith.select %59, %56, %60 : vector<8x1xi1>, vector<8x1xf32>
    %cst_23 = arith.constant dense<0.000000e+00> : vector<1xf32>
    %62 = vector.multi_reduction <add>, %61, %cst_23 [0] : vector<8x1xf32> to vector<1xf32>
    %63 = vector.shape_cast %62 : vector<1xf32> to vector<1x1xf32>
    %cst_24 = arith.constant 5.000000e-01 : f32
    %64 = vector.broadcast %cst_24 : f32 to vector<1x1xf32>
    %65 = arith.mulf %63, %64 : vector<1x1xf32>
    %c0_25 = arith.constant 0 : index
    %c0_26 = arith.constant 0 : index
    %66 = vector.load %arg4[%c0_25, %c0_26] : memref<1x1xf32, #tpu.memory_space<vmem>>, vector<1x1xf32>
    tpu.vector_store %arg4[%c0_25, %c0_26], %65 {strides = array<i32>} : memref<1x1xf32, #tpu.memory_space<vmem>>, vector<1x1xf32>,
    return
  }
}

</mosaic_0001>

<llo_original>
// kernel: tpu_custom_call.1
$region0: #{tpu_custom_call.1}
  #allocation0 [shape = 'u32[]', space=smem, size = 0x4, offset = 0x4, fixed_abs, tag = 'smem constant byte address 0x4 - core index']
  #allocation1 [shape = 'u32[144,128]{1,0:T(1,128)}', space=vmem, size = 0x12000, scoped, tag = 'internal scratch']
  %s0 = inlined_call_operand.vmem [shape: s32[16,1], index: 0, kind: input, shape index: {}]
  %s1 = inlined_call_operand.hbm [shape: f32[128,128], index: 1, kind: input, shape index: {}]
  %s2 = inlined_call_operand.vmem [shape: f32[1,128], index: 2, kind: input, shape index: {}]
  %s3 = inlined_call_operand.hbm [shape: f32[8,8], index: 3, kind: output, shape index: {0}]
  %s4 = inlined_call_operand.hbm [shape: f32[1,1], index: 4, kind: output, shape index: {1}]
  %5 = xla_tuple %s3, %s4
  %s6 = sld [smem:[#allocation0]]
  $region34: #{tpu_custom_call.1} parent=0
    _
  %s8 = ssub.s32 1, %s6
  %s9 = scalar_select 0, %s8, %s6
  $region1: #{tpu_custom_call.1} parent=0
    #allocation2 [shape = 'u8[65536]{0}', space=vmem, size = 0x10000, scoped, tag = 'input window, operand 1, single buffered']
    #allocation3 [shape = 's32[1]{0}', space=sflag, size = 0x4, scoped, tag = 'scoped memory for tpu_custom_call.1']
    #allocation4 [shape = 's32[1]{0}', space=sflag, size = 0x4, scoped, tag = 'scoped memory for tpu_custom_call.1']
    #allocation5 [shape = 'u8[4096]{0}', space=vmem, size = 0x1000, scoped, tag = 'output window, operand 0, single buffered']
    #allocation6 [shape = 'u8[512]{0}', space=vmem, size = 0x400, scoped, tag = 'output window, operand 1, single buffered']
    #allocation7 [shape = 's32[1]{0}', space=sflag, size = 0x4, scoped, tag = 'scoped memory for tpu_custom_call.1']
    %10 = vsyncpa [#allocation3], 0
    %11 = vsyncpa [#allocation4], 0
    %12 = vsyncpa [#allocation7], 0
    // Predicated region
    $region2: #{tpu_custom_call.1} parent=1 // pred_check
      _
    $region3: #{tpu_custom_call.1} parent=1 // pred_check_branch
      %14 = sbr.rel (0) target = $region5
    $region4: #{tpu_custom_call.1} parent=1 // pred_region
      _
    $region5: #{tpu_custom_call.1} parent=1 // pred_fallthru
      _
    // Predicated region
    $region6: #{tpu_custom_call.1} parent=1 // pred_check
      _
    $region7: #{tpu_custom_call.1} parent=1 // pred_check_branch
      %16 = sbr.rel (0) target = $region9
    $region8: #{tpu_custom_call.1} parent=1 // pred_region
      %s18 = ssub.s32 2048, 2048
      %19 = vsyncadd [#allocation3], %s18
      %s20 = sshll.u32 [#allocation2], 4
      %s21 = int_to_ptr.vmem [resolvable:$true] %s20
      %26 = dma.hbm_to_vmem [thread:$0]  %s1, 2048, %s21, [#allocation3], 128, 128, 8
    $region9: #{tpu_custom_call.1} parent=1 // pred_fallthru
      _
    // Predicated region
    $region10: #{tpu_custom_call.1} parent=1 // pred_check
      _
    $region11: #{tpu_custom_call.1} parent=1 // pred_check_branch
      %28 = sbr.rel (0) target = $region13
    $region12: #{tpu_custom_call.1} parent=1 // pred_region
      _
    $region13: #{tpu_custom_call.1} parent=1 // pred_fallthru
      _
    // Predicated region
    $region14: #{tpu_custom_call.1} parent=1 // pred_check
      _
    $region15: #{tpu_custom_call.1} parent=1 // pred_check_branch
      %30 = sbr.rel (0) target = $region17
    $region16: #{tpu_custom_call.1} parent=1 // pred_region
      %31 = dma.done [#allocation3], 2048
    $region17: #{tpu_custom_call.1} parent=1 // pred_fallthru
      _
    %v32 = vld [vmem:[%s0] sm:$0xff]
    %v33 = vld [vmem:[%s0 + $0x8] sm:$0xff]
    %v34 = vlaneseq
    %v35 = vand.u32 %v34, 127
    %36 = vset.pattern.permute.xlu0 0
    %37 = vperm.xlu0 %36, %v32
    %v38 = vpop.permute.xlu0 %37
    %39 = vset.pattern.permute.xlu0 0
    %40 = vperm.xlu0 %39, %v33
    %v41 = vpop.permute.xlu0 %40
    %vm42 = vcmp.eq.s32.totalorder %v38, %v35
    %vm43 = vcmp.eq.s32.totalorder %v41, %v35
    %v44 = vsel %vm42, 1.0, 0.0
    %v45 = vsel %vm43, 1.0, 0.0
    %v46 = vld [vmem:[#allocation2] sm:$0xff]
    %v47 = vld [vmem:[#allocation2 + $0x8] sm:$0xff]
    %v48 = vld [vmem:[#allocation2 + $0x10] sm:$0xff]
    %v49 = vld [vmem:[#allocation2 + $0x18] sm:$0xff]
    %v50 = vld [vmem:[#allocation2 + $0x20] sm:$0xff]
    %v51 = vld [vmem:[#allocation2 + $0x28] sm:$0xff]
    %v52 = vld [vmem:[#allocation2 + $0x30] sm:$0xff]
    %v53 = vld [vmem:[#allocation2 + $0x38] sm:$0xff]
    %v54 = vld [vmem:[#allocation2 + $0x40] sm:$0xff]
    %v55 = vld [vmem:[#allocation2 + $0x48] sm:$0xff]
    %v56 = vld [vmem:[#allocation2 + $0x50] sm:$0xff]
    %v57 = vld [vmem:[#allocation2 + $0x58] sm:$0xff]
    %v58 = vld [vmem:[#allocation2 + $0x60] sm:$0xff]
    %v59 = vld [vmem:[#allocation2 + $0x68] sm:$0xff]
    %v60 = vld [vmem:[#allocation2 + $0x70] sm:$0xff]
    %v61 = vld [vmem:[#allocation2 + $0x78] sm:$0xff]
    %v62 = vld [vmem:[%s2] sm:$0x1]
    %v64 = vlaneseq
    %v65 = vshrl.u32 %v64, 7
    %v66 = vsub.s32 0, %v65
    %v67 = vrot.slane %v62, %v66
    %69 = vmatprep.subr.mxu0 0.0
    %70 = vmatpush1.msra.mxu0 %v46
    %71 = vmatprep.subr.mxu0 0.0
    %72 = vmatpush1.msra.mxu0 %v47
    %73 = vmatprep.subr.mxu0 0.0
    %74 = vmatpush1.msra.mxu0 %v48
    %75 = vmatprep.subr.mxu0 0.0
    %76 = vmatpush1.msra.mxu0 %v49
    %77 = vmatprep.subr.mxu0 0.0
    %78 = vmatpush1.msra.mxu0 %v50
    %79 = vmatprep.subr.mxu0 0.0
    %80 = vmatpush1.msra.mxu0 %v51
    %81 = vmatprep.subr.mxu0 0.0
    %82 = vmatpush1.msra.mxu0 %v52
    %83 = vmatprep.subr.mxu0 0.0
    %84 = vmatpush1.msra.mxu0 %v53
    %85 = vmatprep.subr.mxu0 0.0
    %86 = vmatpush1.msra.mxu0 %v54
    %87 = vmatprep.subr.mxu0 0.0
    %88 = vmatpush1.msra.mxu0 %v55
    %89 = vmatprep.subr.mxu0 0.0
    %90 = vmatpush1.msra.mxu0 %v56
    %91 = vmatprep.subr.mxu0 0.0
    %92 = vmatpush1.msra.mxu0 %v57
    %93 = vmatprep.subr.mxu0 0.0
    %94 = vmatpush1.msra.mxu0 %v58
    %95 = vmatprep.subr.mxu0 0.0
    %96 = vmatpush1.msra.mxu0 %v59
    %97 = vmatprep.subr.mxu0 0.0
    %98 = vmatpush1.msra.mxu0 %v60
    %99 = vmatprep.subr.mxu0 0.0
    %100 = vmatpush1.msra.mxu0 %v61
    %101 = vmatprep.subr.mxu0 0.0
    %102 = vmatpush1.msra.mxu0 0.0
    %103 = vmatprep.subr.mxu0 0.0
    %104 = vmatpush1.msra.mxu0 0.0
    %105 = vmatprep.subr.mxu0 0.0
    %106 = vmatpush1.msra.mxu0 0.0
    %107 = vmatprep.subr.mxu0 0.0
    %108 = vmatpush1.msra.mxu0 0.0
    %109 = vmatprep.subr.mxu0 0.0
    %110 = vmatpush1.msra.mxu0 0.0
    %111 = vmatprep.subr.mxu0 0.0
    %112 = vmatpush1.msra.mxu0 0.0
    %113 = vmatprep.subr.mxu0 0.0
    %114 = vmatpush1.msra.mxu0 0.0
    %115 = vmatprep.subr.mxu0 0.0
    %116 = vmatpush1.msra.mxu0 0.0
    %117 = vmatprep.subr.mxu0 0.0
    %118 = vmatpush1.msra.mxu0 0.0
    %119 = vmatprep.subr.mxu0 0.0
    %120 = vmatpush1.msra.mxu0 0.0
    %121 = vmatprep.subr.mxu0 0.0
    %122 = vmatpush1.msra.mxu0 0.0
    %123 = vmatprep.subr.mxu0 0.0
    %124 = vmatpush1.msra.mxu0 0.0
    %125 = vmatprep.subr.mxu0 0.0
    %126 = vmatpush1.msra.mxu0 0.0
    %127 = vmatprep.subr.mxu0 0.0
    %128 = vmatpush1.msra.mxu0 0.0
    %129 = vmatprep.subr.mxu0 0.0
    %130 = vmatpush1.msra.mxu0 0.0
    %131 = vmatprep.subr.mxu0 0.0
    %132 = vmatpush1.msra.mxu0 0.0
    %133 = vmatprep.mubr.f32.mxu0 0.0
    %134 = vmatmul.mubr.f32.gmra.mrb[0].mxu0 %v44
    %v135 = vpop.f32.mrb[0].mxu0
    %v136 = vadd.f32 %v67, %v135
    %v137 = vpop.f32.mrb[0].mxu0
    %138 = vmatprep.mubr.f32.mxu0 0.0
    %139 = vmatmul.mubr.f32.gmra.mrb[0].mxu0 %v45
    %v140 = vpop.f32.mrb[0].mxu0
    %v141 = vadd.f32 %v67, %v140
    %v142 = vpop.f32.mrb[0].mxu0
    %143 = vdwg.mxu0
    %144 = vmatprep.subr.mxu0 0.0
    %145 = vmatpush1.xpose.msra.mxu0 %v141
    %146 = vmatprep.subr.mxu0 0.0
    %147 = vmatpush1.xpose.msra.mxu0 0.0
    %148 = vmatprep.subr.mxu0 0.0
    %149 = vmatpush1.xpose.msra.mxu0 0.0
    %150 = vmatprep.subr.mxu0 0.0
    %151 = vmatpush1.xpose.msra.mxu0 0.0
    %152 = vmatprep.subr.mxu0 0.0
    %153 = vmatpush1.xpose.msra.mxu0 0.0
    %154 = vmatprep.subr.mxu0 0.0
    %155 = vmatpush1.xpose.msra.mxu0 0.0
    %156 = vmatprep.subr.mxu0 0.0
    %157 = vmatpush1.xpose.msra.mxu0 0.0
    %158 = vmatprep.subr.mxu0 0.0
    %159 = vmatpush1.xpose.msra.mxu0 0.0
    %160 = vmatprep.subr.mxu0 0.0
    %161 = vmatpush1.xpose.msra.mxu0 0.0
    %162 = vmatprep.subr.mxu0 0.0
    %163 = vmatpush1.xpose.msra.mxu0 0.0
    %164 = vmatprep.subr.mxu0 0.0
    %165 = vmatpush1.xpose.msra.mxu0 0.0
    %166 = vmatprep.subr.mxu0 0.0
    %167 = vmatpush1.xpose.msra.mxu0 0.0
    %168 = vmatprep.subr.mxu0 0.0
    %169 = vmatpush1.xpose.msra.mxu0 0.0
    %170 = vmatprep.subr.mxu0 0.0
    %171 = vmatpush1.xpose.msra.mxu0 0.0
    %172 = vmatprep.subr.mxu0 0.0
    %173 = vmatpush1.xpose.msra.mxu0 0.0
    %174 = vmatprep.subr.mxu0 0.0
    %175 = vmatpush1.xpose.msra.mxu0 0.0
    %176 = vmatprep.subr.mxu0 0.0
    %177 = vmatpush1.xpose.msra.mxu0 0.0
    %178 = vmatprep.subr.mxu0 0.0
    %179 = vmatpush1.xpose.msra.mxu0 0.0
    %180 = vmatprep.subr.mxu0 0.0
    %181 = vmatpush1.xpose.msra.mxu0 0.0
    %182 = vmatprep.subr.mxu0 0.0
    %183 = vmatpush1.xpose.msra.mxu0 0.0
    %184 = vmatprep.subr.mxu0 0.0
    %185 = vmatpush1.xpose.msra.mxu0 0.0
    %186 = vmatprep.subr.mxu0 0.0
    %187 = vmatpush1.xpose.msra.mxu0 0.0
    %188 = vmatprep.subr.mxu0 0.0
    %189 = vmatpush1.xpose.msra.mxu0 0.0
    %190 = vmatprep.subr.mxu0 0.0
    %191 = vmatpush1.xpose.msra.mxu0 0.0
    %192 = vmatprep.subr.mxu0 0.0
    %193 = vmatpush1.xpose.msra.mxu0 0.0
    %194 = vmatprep.subr.mxu0 0.0
    %195 = vmatpush1.xpose.msra.mxu0 0.0
    %196 = vmatprep.subr.mxu0 0.0
    %197 = vmatpush1.xpose.msra.mxu0 0.0
    %198 = vmatprep.subr.mxu0 0.0
    %199 = vmatpush1.xpose.msra.mxu0 0.0
    %200 = vmatprep.subr.mxu0 0.0
    %201 = vmatpush1.xpose.msra.mxu0 0.0
    %202 = vmatprep.subr.mxu0 0.0
    %203 = vmatpush1.xpose.msra.mxu0 0.0
    %204 = vmatprep.subr.mxu0 0.0
    %205 = vmatpush1.xpose.msra.mxu0 0.0
    %206 = vmatprep.subr.mxu0 0.0
    %207 = vmatpush1.xpose.msra.mxu0 0.0
    %208 = vmatprep.mubr.f32.mxu0 0.0
    %209 = vmatmul.mubr.f32.gmra.mrb[0].mxu0 %v136
    %v210 = vpop.f32.mrb[0].mxu0
    %v211 = vadd.f32 0.0, %v210
    %v212 = vpop.f32.mrb[0].mxu0
    %213 = vdwg.mxu0
    %v214 = vmul.f32 %v136, %v136
    %215 = vadd.xlane.f32.xlu0 %v214
    %v216 = vpop.xlane.xlu0 %215
    %v217 = vmul.f32 %v141, %v141
    %218 = vmatprep.subr.mxu0 0.0
    %219 = vmatpush1.xpose.msra.mxu0 %v217
    %220 = vmatprep.subr.mxu0 0.0
    %221 = vmatpush1.xpose.msra.mxu0 0.0
    %222 = vmatprep.subr.mxu0 0.0
    %223 = vmatpush1.xpose.msra.mxu0 0.0
    %224 = vmatprep.subr.mxu0 0.0
    %225 = vmatpush1.xpose.msra.mxu0 0.0
    %226 = vmatprep.subr.mxu0 0.0
    %227 = vmatpush1.xpose.msra.mxu0 0.0
    %228 = vmatprep.subr.mxu0 0.0
    %229 = vmatpush1.xpose.msra.mxu0 0.0
    %230 = vmatprep.subr.mxu0 0.0
    %231 = vmatpush1.xpose.msra.mxu0 0.0
    %232 = vmatprep.subr.mxu0 0.0
    %233 = vmatpush1.xpose.msra.mxu0 0.0
    %234 = vmatprep.subr.mxu0 0.0
    %235 = vmatpush1.xpose.msra.mxu0 0.0
    %236 = vmatprep.subr.mxu0 0.0
    %237 = vmatpush1.xpose.msra.mxu0 0.0
    %238 = vmatprep.subr.mxu0 0.0
    %239 = vmatpush1.xpose.msra.mxu0 0.0
    %240 = vmatprep.subr.mxu0 0.0
    %241 = vmatpush1.xpose.msra.mxu0 0.0
    %242 = vmatprep.subr.mxu0 0.0
    %243 = vmatpush1.xpose.msra.mxu0 0.0
    %244 = vmatprep.subr.mxu0 0.0
    %245 = vmatpush1.xpose.msra.mxu0 0.0
    %246 = vmatprep.subr.mxu0 0.0
    %247 = vmatpush1.xpose.msra.mxu0 0.0
    %248 = vmatprep.subr.mxu0 0.0
    %249 = vmatpush1.xpose.msra.mxu0 0.0
    %250 = vmatprep.subr.mxu0 0.0
    %251 = vmatpush1.xpose.msra.mxu0 0.0
    %252 = vmatprep.subr.mxu0 0.0
    %253 = vmatpush1.xpose.msra.mxu0 0.0
    %254 = vmatprep.subr.mxu0 0.0
    %255 = vmatpush1.xpose.msra.mxu0 0.0
    %256 = vmatprep.subr.mxu0 0.0
    %257 = vmatpush1.xpose.msra.mxu0 0.0
    %258 = vmatprep.subr.mxu0 0.0
    %259 = vmatpush1.xpose.msra.mxu0 0.0
    %260 = vmatprep.subr.mxu0 0.0
    %261 = vmatpush1.xpose.msra.mxu0 0.0
    %262 = vmatprep.subr.mxu0 0.0
    %263 = vmatpush1.xpose.msra.mxu0 0.0
    %264 = vmatprep.subr.mxu0 0.0
    %265 = vmatpush1.xpose.msra.mxu0 0.0
    %266 = vmatprep.subr.mxu0 0.0
    %267 = vmatpush1.xpose.msra.mxu0 0.0
    %268 = vmatprep.subr.mxu0 0.0
    %269 = vmatpush1.xpose.msra.mxu0 0.0
    %270 = vmatprep.subr.mxu0 0.0
    %271 = vmatpush1.xpose.msra.mxu0 0.0
    %272 = vmatprep.subr.mxu0 0.0
    %273 = vmatpush1.xpose.msra.mxu0 0.0
    %274 = vmatprep.subr.mxu0 0.0
    %275 = vmatpush1.xpose.msra.mxu0 0.0
    %276 = vmatprep.subr.mxu0 0.0
    %277 = vmatpush1.xpose.msra.mxu0 0.0
    %278 = vmatprep.subr.mxu0 0.0
    %279 = vmatpush1.xpose.msra.mxu0 0.0
    %280 = vmatprep.subr.mxu0 0.0
    %281 = vmatpush1.xpose.msra.mxu0 0.0
    %282 = vmatprep.mubr.f32.mxu0 0.0
    %283 = vmatmul.mubr.f32.gmra.mrb[0].mxu0 1.0
    %v284 = vpop.f32.mrb[0].mxu0
    %v285 = vadd.f32 0.0, %v284
    %v286 = vpop.f32.mrb[0].mxu0
    %287 = vdwg.mxu0
    %v288 = vlaneseq
    %v289 = vshrl.u32 %v288, 7
    %v290 = vsub.s32 0, %v289
    %v291 = vrot.slane %v285, %v290
    %v292 = vmul.f32 %v216, %v291
    %v293 = vmax.f32 %v292, 1e-16
    %v294 = vrsqrt.pop %v293
    %v295 = vmul.f32 %v211, %v294
    %vm296 = vcmask 64512
    %297 = vst.msk [vmem:[#allocation5] sm:$0xff] %vm296, %v295
    %v298 = vmul.f32 %v295, 10.0
    %v299 = vlaneseq
    %v300 = vshrl.u32 %v299, 7
    %v301 = vmul.u32 %v300, 2
    %vm302 = vcmp.ge.s32.totalorder %v35, %v301
    %v303 = vadd.s32 %v301, 2
    %vm304 = vcmp.lt.s32.totalorder %v35, %v303
    %vm305 = vmand %vm302, %vm304
    %v306 = vsel %vm305, %v298, -1e+30
    %v307 = vsel %vm296, %v306, -inf
    %308 = vmax.xlane.f32.xlu0 %v307
    %v309 = vpop.xlane.xlu0 %308
    %v310 = vsub.f32 %v306, %v309
    %v311 = vmul.f32 %v310, 1.442695
    %v312 = vpow.pop %v311
    %v313 = vsel %vm296, %v312, 0.0
    %314 = vadd.xlane.f32.xlu0 %v313
    %v315 = vpop.xlane.xlu0 %314
    %v316 = vlog2.pop %v315
    %v317 = vmul.f32 %v316, 0.6931472
    %v318 = vadd.f32 %v309, %v317
    %vm319 = vcmp.eq.s32.totalorder %v35, %v301
    %v320 = vsel %vm319, %v298, 0.0
    %v321 = vsel %vm296, %v320, 0.0
    %322 = vadd.xlane.f32.xlu0 %v321
    %v323 = vpop.xlane.xlu0 %322
    %v324 = vsub.f32 %v318, %v323
    %vm325 = vcmp.lt.s32.totalorder %v300, 2
    %v326 = vsel %vm325, %v324, 0.0
    %v327 = vrot.slane %v326, 4
    %v328 = vadd.f32 %v326, %v327
    %v329 = vrot.slane %v328, 2
    %v330 = vadd.f32 %v328, %v329
    %v331 = vrot.slane %v330, 1
    %v332 = vadd.f32 %v330, %v331
    %v333 = vmul.f32 %v332, 0.5
    %vm334 = vcmask 0
    %335 = vst.msk [vmem:[#allocation6] sm:$0x1] %vm334, %v333
    // Predicated region
    $region18: #{tpu_custom_call.1} parent=1 // pred_check
      _
    $region19: #{tpu_custom_call.1} parent=1 // pred_check_branch
      %337 = sbr.rel (0) target = $region21
    $region20: #{tpu_custom_call.1} parent=1 // pred_region
      %s339 = ssub.s32 128, 128
      %340 = vsyncadd [#allocation4], %s339
      %s342 = sshll.u32 [#allocation5], 4
      %s343 = int_to_ptr.vmem [resolvable:$true] %s342
      %345 = dma.vmem_to_hbm [thread:$0]  %s343, 128, %s3, [#allocation4]
    $region21: #{tpu_custom_call.1} parent=1 // pred_fallthru
      _
    // Predicated region
    $region22: #{tpu_custom_call.1} parent=1 // pred_check
      _
    $region23: #{tpu_custom_call.1} parent=1 // pred_check_branch
      %347 = sbr.rel (0) target = $region25
    $region24: #{tpu_custom_call.1} parent=1 // pred_region
      %s349 = ssub.s32 16, 16
      %350 = vsyncadd [#allocation7], %s349
      %s352 = sshll.u32 [#allocation6], 4
      %s353 = int_to_ptr.vmem [resolvable:$true] %s352
      %355 = dma.vmem_to_hbm [thread:$0]  %s353, 16, %s4, [#allocation7]
    $region25: #{tpu_custom_call.1} parent=1 // pred_fallthru
      _
    // Predicated region
    $region26: #{tpu_custom_call.1} parent=1 // pred_check
      _
    $region27: #{tpu_custom_call.1} parent=1 // pred_check_branch
      %357 = sbr.rel (0) target = $region29
    $region28: #{tpu_custom_call.1} parent=1 // pred_region
      %358 = dma.done [#allocation4], 128
    $region29: #{tpu_custom_call.1} parent=1 // pred_fallthru
      _
    // Predicated region
    $region30: #{tpu_custom_call.1} parent=1 // pred_check
      _
    $region31: #{tpu_custom_call.1} parent=1 // pred_check_branch
      %360 = sbr.rel (0) target = $region33
    $region32: #{tpu_custom_call.1} parent=1 // pred_region
      %361 = dma.done [#allocation7], 16
    $region33: #{tpu_custom_call.1} parent=1 // pred_fallthru
      _
    %362 = vsyncpa [#allocation3], 1
    %363 = vsyncpa [#allocation4], 1
    %364 = vsyncpa [#allocation7], 1

</llo_original>
